<compile_context>
chip_gen: v5e
topology: v5e:2x2
jax: 0.10.0
libtpu: 0.0.40
codegen_flags: <defaults>
</compile_context>

<pallas_src>
import functools

import jax
import jax.numpy as jnp
from jax import lax
from jax.experimental import pallas as pl
from jax.experimental.pallas import tpu as pltpu

# Large negative, but far from the f32 overflow boundary: exp(MASK_VALUE - m) == 0
# for any finite row max m, and fully-masked rows degrade to a uniform softmax
# exactly like the PyTorch reference.
MASK_VALUE = -0.7 * float(jnp.finfo(jnp.float32).max)


def _attend_body(mask_ref, q_ref, k_ref, v_ref, o_ref, m_sc, l_sc, acc_sc, *,
                 scale, causal, nq, nk, tq, tk, n_kt):
    qt = pl.program_id(1)
    kt = pl.program_id(2)

    @pl.when(kt == 0)
    def _init():
        m_sc[...] = jnp.full_like(m_sc, MASK_VALUE)
        l_sc[...] = jnp.zeros_like(l_sc)
        acc_sc[...] = jnp.zeros_like(acc_sc)

    def _update():
        q = q_ref[0]                                     # (TQ, D) native dtype
        k = k_ref[0]                                     # (TK, D) native dtype
        # Scores: contract last dims directly (no k transpose), f32 accumulate;
        # scale applied post-matmul so rounding matches the reference.
        s = lax.dot_general(q, k, (((1,), (1,)), ((), ())),
                            preferred_element_type=jnp.float32) * scale

        valid = None
        if mask_ref is not None:
            valid = mask_ref[...] > 0.5                  # (1, TK), broadcasts over rows
        if causal:
            # Per-row query position from a tiny (TQ, 1) iota column.
            rloc = lax.broadcasted_iota(jnp.int32, (tq, 1), 0)
            if (nq & (nq - 1)) == 0:
                qpos = jnp.bitwise_and(rloc + qt * tq, nq - 1)
            else:
                qpos = lax.rem(rloc + qt * tq, nq)
            col = lax.broadcasted_iota(jnp.int32, (tq, tk), 1)
            keep = col <= (qpos + ((nk - nq) - kt * tk))
            valid = keep if valid is None else jnp.logical_and(valid, keep)
        if valid is not None:
            s = jnp.where(valid, s, MASK_VALUE)          # single select, exact constant

        # Online softmax update (numerically stable, no -inf anywhere).
        m_prev = m_sc[...]
        m_new = jnp.maximum(m_prev, jnp.max(s, axis=-1, keepdims=True))
        alpha = jnp.exp(m_prev - m_new)
        p = jnp.exp(s - m_new)                           # (TQ, TK) f32
        l_sc[...] = alpha * l_sc[...] + jnp.sum(p, axis=-1, keepdims=True)
        acc_sc[...] = alpha * acc_sc[...] + lax.dot_general(
            p.astype(v_ref.dtype), v_ref[0], (((1,), (0,)), ((), ())),
            preferred_element_type=jnp.float32)
        m_sc[...] = m_new

    if causal and nk >= nq:
        # Skip kv blocks that are entirely above the causal diagonal for this q tile.
        if nq % tq == 0:                                 # tile lies within one head
            i_max = lax.rem(qt * tq, nq) + (tq - 1)
        else:                                            # tile may straddle heads
            i_max = nq - 1                               # conservative: no false skip
        not_skipped = (kt * tk) <= (i_max + (nk - nq))
        pl.when(not_skipped)(_update)
    else:
        _update()

    @pl.when(kt == n_kt - 1)
    def _finalize():
        # Deferred normalization on the small (TQ, D) accumulator; exact divide.
        o_ref[0] = (acc_sc[...] * (1.0 / l_sc[...])).astype(o_ref.dtype)


def _attend_kernel_masked(mask_ref, q_ref, k_ref, v_ref, o_ref, m_sc, l_sc, acc_sc, **kw):
    _attend_body(mask_ref, q_ref, k_ref, v_ref, o_ref, m_sc, l_sc, acc_sc, **kw)


def _attend_kernel_plain(q_ref, k_ref, v_ref, o_ref, m_sc, l_sc, acc_sc, **kw):
    _attend_body(None, q_ref, k_ref, v_ref, o_ref, m_sc, l_sc, acc_sc, **kw)


def _pick_tile(total, candidates):
    for c in candidates:
        if c <= total and total % c == 0:
            return c
    return total


def attend(q, k, v, mask=None, causal=False, block_q=None, block_k=None):
    """Pallas equivalent of Attend.forward (use_flash_attn=False, k/v ndim==3)."""
    B, H, Nq, D = q.shape
    Bk, Nk, Dk = k.shape
    assert Bk == B and Dk == D and v.shape == k.shape
    scale = float(D) ** -0.5

    HNq = H * Nq
    q2 = q.reshape(B, HNq, D)                            # free, contiguous reshape

    TQ = block_q if block_q is not None else _pick_tile(HNq, (256, 128, 64, 32, 16, 8))
    TK = block_k if block_k is not None else _pick_tile(Nk, (512, 256, 128))
    assert HNq % TQ == 0 and Nk % TK == 0, "block sizes must divide H*Nq and Nk"
    n_qt, n_kt = HNq // TQ, Nk // TK
    grid = (B, n_qt, n_kt)

    q_spec = pl.BlockSpec((1, TQ, D), lambda b, qt, kt: (b, qt, 0))
    kv_spec = pl.BlockSpec((1, TK, D), lambda b, qt, kt: (b, kt, 0))
    o_spec = pl.BlockSpec((1, TQ, D), lambda b, qt, kt: (b, qt, 0))
    out_shape = jax.ShapeDtypeStruct((B, HNq, D), q.dtype)

    scratch_shapes = [pltpu.VMEM((TQ, 1), jnp.float32),   # running max m
                      pltpu.VMEM((TQ, 1), jnp.float32),   # running denom l
                      pltpu.VMEM((TQ, D), jnp.float32)]   # output accumulator

    # vmem_limit sized from the actual per-step footprint (double-buffered blocks
    # + scratch + f32 score/prob temporaries), clamped to sane per-generation bounds.
    itemsize = jnp.dtype(q.dtype).itemsize
    block_bytes = (2 * TQ * D * itemsize          # q (double buffered)
                   + 2 * 2 * TK * D * itemsize    # k, v
                   + 2 * TQ * D * itemsize        # out
                   + 2 * TK * 4)                  # key-mask bias
    scratch_bytes = 2 * TQ * 4 + TQ * D * 4
    interm_bytes = 6 * TQ * TK * 4                # s, p, valid + headroom
    vmem_limit = int(1.5 * (block_bytes + scratch_bytes + interm_bytes)) + (8 << 20)
    vmem_limit = max(32 << 20, min(vmem_limit, 100 << 20))

    cparams = pltpu.CompilerParams(
        dimension_semantics=("parallel", "parallel", "arbitrary"),
        vmem_limit_bytes=vmem_limit)

    static_kw = dict(scale=scale, causal=causal, nq=Nq, nk=Nk, tq=TQ, tk=TK, n_kt=n_kt)

    if mask is None:
        kernel = functools.partial(_attend_kernel_plain, **static_kw)
        in_specs = [q_spec, kv_spec, kv_spec]
        args = (q2, k, v)
    else:
        assert mask.shape == (B, Nk)
        maskf = mask.astype(jnp.float32)                 # tiny (B, Nk) array
        mask_spec = pl.BlockSpec((1, TK), lambda b, qt, kt: (b, kt))
        kernel = functools.partial(_attend_kernel_masked, **static_kw)
        in_specs = [mask_spec, q_spec, kv_spec, kv_spec]
        args = (maskf, q2, k, v)

    out = pl.pallas_call(
        kernel,
        out_shape=out_shape,
        grid_spec=pltpu.PrefetchScalarGridSpec(
            num_scalar_prefetch=0,
            grid=grid,
            in_specs=in_specs,
            out_specs=o_spec,
            scratch_shapes=scratch_shapes),
        compiler_params=cparams,
    )(*args)

    return out.reshape(B, H, Nq, D)


def attend_reference(q, k, v, mask=None, causal=False):
    """Pure-JAX reference mirroring the PyTorch module (non-flash path)."""
    scale = q.shape[-1] ** (-0.5)
    sim = jnp.einsum("bhid,bjd->bhij", q.astype(jnp.float32),
                     k.astype(jnp.float32)) * scale
    neg_max = -jnp.finfo(sim.dtype).max
    if mask is not None:
        sim = jnp.where(mask[:, None, None, :], sim, neg_max)
    if causal:
        i, j = sim.shape[-2:]
        causal_mask = jnp.triu(jnp.ones((i, j), dtype=bool), j - i + 1)
        sim = jnp.where(causal_mask, neg_max, sim)
    attn = jax.nn.softmax(sim, axis=-1)
    return jnp.einsum("bhij,bjd->bhid", attn, v.astype(jnp.float32))


if __name__ == "__main__":
    key = jax.random.PRNGKey(0)
    kq, kk, kv_, km = jax.random.split(key, 4)

    # ---- small config (single q tile, single kv tile) -----------------------
    B, H, N, D = 2, 2, 8, 32
    q = jax.random.normal(kq, (B, H, N, D), dtype=jnp.float32)
    k = jax.random.normal(kk, (B, N, D), dtype=jnp.float32)
    v = jax.random.normal(kv_, (B, N, D), dtype=jnp.float32)
    mask = jax.random.bernoulli(km, 0.8, (B, N)).at[:, 0].set(True)

    # Tolerance budget: kernel math is exactly equivalent to the reference; the
    # residual difference comes from TPU default (bf16) MXU rounding of
    # unnormalized vs. normalized probabilities in the attn@v matmul.
    tol = dict(atol=2e-2, rtol=2e-2)

    out1 = attend(q, k, v, mask=None, causal=True)
    jax.block_until_ready(out1)
    assert jnp.allclose(out1, attend_reference(q, k, v, mask=None, causal=True), **tol), \
        "causal mismatch"

    out2 = attend(q, k, v, mask=mask, causal=False)
    jax.block_until_ready(out2)
    assert jnp.allclose(out2, attend_reference(q, k, v, mask=mask, causal=False), **tol), \
        "masked mismatch"

    out3 = attend(q, k, v, mask=mask, causal=True)
    jax.block_until_ready(out3)
    assert jnp.allclose(out3, attend_reference(q, k, v, mask=mask, causal=True), **tol), \
        "causal+masked mismatch"

    # ---- larger config: exercises q tiling, kv-tiled online softmax and the
    # causal block-skip (blocks entirely above the diagonal are never computed).
    B2, H2, N2, D2 = 2, 2, 256, 64
    kq2, kk2, kv2, km2 = jax.random.split(jax.random.PRNGKey(0), 4)
    q2 = jax.random.normal(kq2, (B2, H2, N2, D2), dtype=jnp.float32)
    k2 = jax.random.normal(kk2, (B2, N2, D2), dtype=jnp.float32)
    v2 = jax.random.normal(kv2, (B2, N2, D2), dtype=jnp.float32)
    mask2 = jax.random.bernoulli(km2, 0.9, (B2, N2)).at[:, 0].set(True)
    tol_big = dict(atol=3e-2, rtol=3e-2)   # extra margin for online-softmax reordering

    out4 = attend(q2, k2, v2, mask=mask2, causal=True, block_q=64, block_k=128)
    jax.block_until_ready(out4)
    assert jnp.allclose(out4, attend_reference(q2, k2, v2, mask=mask2, causal=True),
                        **tol_big), "tiled causal+masked mismatch"

    out5 = attend(q2, k2, v2, mask=None, causal=False, block_q=64, block_k=128)
    jax.block_until_ready(out5)
    assert jnp.allclose(out5, attend_reference(q2, k2, v2, mask=None, causal=False),
                        **tol_big), "tiled plain mismatch"

    # ---- bf16 operand path (native-dtype MXU matmuls, f32 softmax) ----------
    qb, kb, vb = (t.astype(jnp.bfloat16) for t in (q, k, v))
    out_bf = attend(qb, kb, vb, mask=mask, causal=True)
    jax.block_until_ready(out_bf)
    ref_bf = attend_reference(qb, kb, vb, mask=mask, causal=True)
    assert jnp.max(jnp.abs(out_bf.astype(jnp.float32) - ref_bf)) < 1.5e-1, "bf16 mismatch"

    print("KERNEL_OK")
</pallas_src>

<mosaic_0001>
module attributes {stable_mosaic.version = 11 : i64} {
  func.func @_attend_kernel_plain(%arg0: i32, %arg1: i32, %arg2: i32, %arg3: memref<1x16x32xf32, #tpu.memory_space<vmem>>, %arg4: memref<1x8x32xf32, #tpu.memory_space<vmem>>, %arg5: memref<1x8x32xf32, #tpu.memory_space<vmem>>, %arg6: memref<1x16x32xf32, #tpu.memory_space<vmem>>, %arg7: memref<16x1xf32, #tpu.memory_space<vmem>>, %arg8: memref<16x1xf32, #tpu.memory_space<vmem>>, %arg9: memref<16x32xf32, #tpu.memory_space<vmem>>) attributes {dimension_semantics = [#tpu.dimension_semantics<parallel>, #tpu.dimension_semantics<parallel>, #tpu.dimension_semantics<arbitrary>], iteration_bounds = array<i64: 2, 1, 1>, scalar_prefetch = 0 : i64, scratch_operands = 3 : i64, tpu.core_type = #tpu.core_type<tc>, window_params = [{transform_indices = @transform_0, window_bounds = array<i64: 1, 16, 32>}, {transform_indices = @transform_1, window_bounds = array<i64: 1, 8, 32>}, {transform_indices = @transform_2, window_bounds = array<i64: 1, 8, 32>}, {transform_indices = @transform_3, window_bounds = array<i64: 1, 16, 32>}]} {
    %c0_i32 = arith.constant 0 : i32
    %0 = arith.cmpi eq, %arg2, %c0_i32 : i32
    %1 = arith.extui %0 : i1 to i32
    %c0_i32_0 = arith.constant 0 : i32
    %2 = arith.cmpi ne, %1, %c0_i32_0 : i32
    scf.if %2 {
      %cst = arith.constant -2.38197633E+38 : f32
      %10 = vector.broadcast %cst : f32 to vector<16x1xf32>
      %c0 = arith.constant 0 : index
      %c0_4 = arith.constant 0 : index
      %11 = vector.load %arg7[%c0, %c0_4] : memref<16x1xf32, #tpu.memory_space<vmem>>, vector<16x1xf32>
      tpu.vector_store %arg7[%c0, %c0_4], %10 {strides = array<i32>} : memref<16x1xf32, #tpu.memory_space<vmem>>, vector<16x1xf32>,
      %cst_5 = arith.constant 0.000000e+00 : f32
      %12 = vector.broadcast %cst_5 : f32 to vector<16x1xf32>
      %c0_6 = arith.constant 0 : index
      %c0_7 = arith.constant 0 : index
      %13 = vector.load %arg8[%c0_6, %c0_7] : memref<16x1xf32, #tpu.memory_space<vmem>>, vector<16x1xf32>
      tpu.vector_store %arg8[%c0_6, %c0_7], %12 {strides = array<i32>} : memref<16x1xf32, #tpu.memory_space<vmem>>, vector<16x1xf32>,
      %cst_8 = arith.constant 0.000000e+00 : f32
      %14 = vector.broadcast %cst_8 : f32 to vector<16x32xf32>
      %c0_9 = arith.constant 0 : index
      %c0_10 = arith.constant 0 : index
      %15 = vector.load %arg9[%c0_9, %c0_10] : memref<16x32xf32, #tpu.memory_space<vmem>>, vector<16x32xf32>
      tpu.vector_store %arg9[%c0_9, %c0_10], %14 {strides = array<i32>} : memref<16x32xf32, #tpu.memory_space<vmem>>, vector<16x32xf32>,
    } else {
    }
    %c8_i32 = arith.constant 8 : i32
    %3 = arith.muli %arg2, %c8_i32 : i32
    %c7_i32 = arith.constant 7 : i32
    %4 = arith.cmpi sle, %3, %c7_i32 : i32
    %5 = arith.extui %4 : i1 to i32
    %c0_i32_1 = arith.constant 0 : i32
    %6 = arith.cmpi ne, %5, %c0_i32_1 : i32
    scf.if %6 {
      %c0 = arith.constant 0 : index
      %c0_4 = arith.constant 0 : index
      %c0_5 = arith.constant 0 : index
      %10 = vector.load %arg3[%c0, %c0_4, %c0_5] : memref<1x16x32xf32, #tpu.memory_space<vmem>>, vector<1x16x32xf32>
      %11 = vector.shape_cast %10 : vector<1x16x32xf32> to vector<16x32xf32>
      %c0_6 = arith.constant 0 : index
      %c0_7 = arith.constant 0 : index
      %c0_8 = arith.constant 0 : index
      %12 = vector.load %arg4[%c0_6, %c0_7, %c0_8] : memref<1x8x32xf32, #tpu.memory_space<vmem>>, vector<1x8x32xf32>
      %13 = vector.shape_cast %12 : vector<1x8x32xf32> to vector<8x32xf32>
      %cst = arith.constant dense<0.000000e+00> : vector<16x8xf32>
      %14 = tpu.matmul %11, %13, %cst {dimension_numbers = #tpu.dot_dimension_numbers<[1], [1], [0], [0], [0, 0, 1, 0], [], []>} : vector<16x32xf32>, vector<8x32xf32>, vector<16x8xf32> -> vector<16x8xf32>
      %cst_9 = arith.constant 0.176776692 : f32
      %15 = vector.broadcast %cst_9 : f32 to vector<16x8xf32>
      %16 = arith.mulf %14, %15 : vector<16x8xf32>
      %17 = tpu.iota {dimensions = array<i32: 0>} : vector<16x1xi32>
      %c16_i32 = arith.constant 16 : i32
      %18 = arith.muli %arg1, %c16_i32 : i32
      %19 = vector.broadcast %18 : i32 to vector<16x1xi32>
      %20 = arith.addi %17, %19 : vector<16x1xi32>
      %c7_i32_10 = arith.constant 7 : i32
      %21 = vector.broadcast %c7_i32_10 : i32 to vector<16x1xi32>
      %22 = arith.andi %20, %21 : vector<16x1xi32>
      %23 = tpu.iota {dimensions = array<i32: 1>} : vector<16x8xi32>
      %c8_i32_11 = arith.constant 8 : i32
      %24 = arith.muli %arg2, %c8_i32_11 : i32
      %c0_i32_12 = arith.constant 0 : i32
      %25 = arith.subi %c0_i32_12, %24 : i32
      %26 = vector.broadcast %25 : i32 to vector<16x1xi32>
      %27 = arith.addi %22, %26 : vector<16x1xi32>
      %28 = vector.broadcast %27 : vector<16x1xi32> to vector<16x8xi32>
      %29 = arith.cmpi sle, %23, %28 : vector<16x8xi32>
      %cst_13 = arith.constant -2.38197633E+38 : f32
      %30 = vector.broadcast %cst_13 : f32 to vector<16x8xf32>
      %31 = arith.select %29, %16, %30 : vector<16x8xi1>, vector<16x8xf32>
      %c0_14 = arith.constant 0 : index
      %c0_15 = arith.constant 0 : index
      %32 = vector.load %arg7[%c0_14, %c0_15] : memref<16x1xf32, #tpu.memory_space<vmem>>, vector<16x1xf32>
      %cst_16 = arith.constant dense<0xFF800000> : vector<16xf32>
      %33 = vector.multi_reduction <maximumf>, %31, %cst_16 [1] : vector<16x8xf32> to vector<16xf32>
      %34 = vector.shape_cast %33 : vector<16xf32> to vector<16x1xf32>
      %35 = arith.maximumf %32, %34 : vector<16x1xf32>
      %36 = arith.subf %32, %35 : vector<16x1xf32>
      %37 = math.exp %36 : vector<16x1xf32>
      %38 = vector.broadcast %35 : vector<16x1xf32> to vector<16x8xf32>
      %39 = arith.subf %31, %38 : vector<16x8xf32>
      %40 = math.exp %39 : vector<16x8xf32>
      %c0_17 = arith.constant 0 : index
      %c0_18 = arith.constant 0 : index
      %41 = vector.load %arg8[%c0_17, %c0_18] : memref<16x1xf32, #tpu.memory_space<vmem>>, vector<16x1xf32>
      %42 = arith.mulf %37, %41 : vector<16x1xf32>
      %cst_19 = arith.constant dense<0.000000e+00> : vector<16xf32>
      %43 = vector.multi_reduction <add>, %40, %cst_19 [1] : vector<16x8xf32> to vector<16xf32>
      %44 = vector.shape_cast %43 : vector<16xf32> to vector<16x1xf32>
      %45 = arith.addf %42, %44 : vector<16x1xf32>
      %c0_20 = arith.constant 0 : index
      %c0_21 = arith.constant 0 : index
      %46 = vector.load %arg8[%c0_20, %c0_21] : memref<16x1xf32, #tpu.memory_space<vmem>>, vector<16x1xf32>
      tpu.vector_store %arg8[%c0_20, %c0_21], %45 {strides = array<i32>} : memref<16x1xf32, #tpu.memory_space<vmem>>, vector<16x1xf32>,
      %c0_22 = arith.constant 0 : index
      %c0_23 = arith.constant 0 : index
      %47 = vector.load %arg9[%c0_22, %c0_23] : memref<16x32xf32, #tpu.memory_space<vmem>>, vector<16x32xf32>
      %48 = vector.broadcast %37 : vector<16x1xf32> to vector<16x32xf32>
      %49 = arith.mulf %48, %47 : vector<16x32xf32>
      %c0_24 = arith.constant 0 : index
      %c0_25 = arith.constant 0 : index
      %c0_26 = arith.constant 0 : index
      %50 = vector.load %arg5[%c0_24, %c0_25, %c0_26] : memref<1x8x32xf32, #tpu.memory_space<vmem>>, vector<1x8x32xf32>
      %51 = vector.shape_cast %50 : vector<1x8x32xf32> to vector<8x32xf32>
      %cst_27 = arith.constant dense<0.000000e+00> : vector<16x32xf32>
      %52 = tpu.matmul %40, %51, %cst_27 {dimension_numbers = #tpu.dot_dimension_numbers<[1], [0], [0], [1], [0, 0, 1, 1], [], []>} : vector<16x8xf32>, vector<8x32xf32>, vector<16x32xf32> -> vector<16x32xf32>
      %53 = arith.addf %49, %52 : vector<16x32xf32>
      %c0_28 = arith.constant 0 : index
      %c0_29 = arith.constant 0 : index
      %54 = vector.load %arg9[%c0_28, %c0_29] : memref<16x32xf32, #tpu.memory_space<vmem>>, vector<16x32xf32>
      tpu.vector_store %arg9[%c0_28, %c0_29], %53 {strides = array<i32>} : memref<16x32xf32, #tpu.memory_space<vmem>>, vector<16x32xf32>,
      %c0_30 = arith.constant 0 : index
      %c0_31 = arith.constant 0 : index
      %55 = vector.load %arg7[%c0_30, %c0_31] : memref<16x1xf32, #tpu.memory_space<vmem>>, vector<16x1xf32>
      tpu.vector_store %arg7[%c0_30, %c0_31], %35 {strides = array<i32>} : memref<16x1xf32, #tpu.memory_space<vmem>>, vector<16x1xf32>,
    } else {
    }
    %c0_i32_2 = arith.constant 0 : i32
    %7 = arith.cmpi eq, %arg2, %c0_i32_2 : i32
    %8 = arith.extui %7 : i1 to i32
    %c0_i32_3 = arith.constant 0 : i32
    %9 = arith.cmpi ne, %8, %c0_i32_3 : i32
    scf.if %9 {
      %c0 = arith.constant 0 : index
      %c0_4 = arith.constant 0 : index
      %10 = vector.load %arg9[%c0, %c0_4] : memref<16x32xf32, #tpu.memory_space<vmem>>, vector<16x32xf32>
      %c0_5 = arith.constant 0 : index
      %c0_6 = arith.constant 0 : index
      %11 = vector.load %arg8[%c0_5, %c0_6] : memref<16x1xf32, #tpu.memory_space<vmem>>, vector<16x1xf32>
      %cst = arith.constant 1.000000e+00 : f32
      %12 = vector.broadcast %cst : f32 to vector<16x1xf32>
      %13 = arith.divf %12, %11 : vector<16x1xf32>
      %14 = vector.broadcast %13 : vector<16x1xf32> to vector<16x32xf32>
      %15 = arith.mulf %10, %14 : vector<16x32xf32>
      %c0_7 = arith.constant 0 : index
      %c0_8 = arith.constant 0 : index
      %c0_9 = arith.constant 0 : index
      %16 = vector.load %arg6[%c0_7, %c0_8, %c0_9] : memref<1x16x32xf32, #tpu.memory_space<vmem>>, vector<1x16x32xf32>
      %17 = vector.shape_cast %16 : vector<1x16x32xf32> to vector<16x32xf32>
      %18 = vector.shape_cast %15 : vector<16x32xf32> to vector<1x16x32xf32>
      tpu.vector_store %arg6[%c0_7, %c0_8, %c0_9], %18 {strides = array<i32>} : memref<1x16x32xf32, #tpu.memory_space<vmem>>, vector<1x16x32xf32>,
    } else {
    }
    return
  }
  func.func @transform_0(%arg0: i32, %arg1: i32, %arg2: i32) -> (i32, i32, i32) {
    %c0_i32 = arith.constant 0 : i32
    %c0_i32_0 = arith.constant 0 : i32
    return %arg0, %arg1, %c0_i32 : i32, i32, i32
  }
  func.func @transform_1(%arg0: i32, %arg1: i32, %arg2: i32) -> (i32, i32, i32) {
    %c0_i32 = arith.constant 0 : i32
    %c0_i32_0 = arith.constant 0 : i32
    return %arg0, %arg2, %c0_i32 : i32, i32, i32
  }
  func.func @transform_2(%arg0: i32, %arg1: i32, %arg2: i32) -> (i32, i32, i32) {
    %c0_i32 = arith.constant 0 : i32
    %c0_i32_0 = arith.constant 0 : i32
    return %arg0, %arg2, %c0_i32 : i32, i32, i32
  }
  func.func @transform_3(%arg0: i32, %arg1: i32, %arg2: i32) -> (i32, i32, i32) {
    %c0_i32 = arith.constant 0 : i32
    %c0_i32_0 = arith.constant 0 : i32
    return %arg0, %arg1, %c0_i32 : i32, i32, i32
  }
}

</mosaic_0001>

<llo_original>
// kernel: tpu_custom_call.1
$region0: #{tpu_custom_call.1}
  #allocation0 [shape = 'u32[]', space=smem, size = 0x4, offset = 0x4, fixed_abs, tag = 'smem constant byte address 0x4 - core index']
  #allocation1 [shape = 'u32[72,128]{1,0:T(1,128)}', space=vmem, size = 0x9000, scoped, tag = 'internal scratch']
  #allocation2 [shape = 'f32[16,1]{1,0:T(8,128)}', space=vmem, size = 0x2000, scoped, tag = 'scratch operand']
  #allocation3 [shape = 'f32[16,1]{1,0:T(8,128)}', space=vmem, size = 0x2000, scoped, tag = 'scratch operand']
  #allocation4 [shape = 'f32[16,32]{1,0:T(8,128)}', space=vmem, size = 0x2000, scoped, tag = 'scratch operand']
  %s0 = inlined_call_operand.hbm [shape: f32[2,16,32], index: 0, kind: input, shape index: {}]
  %s1 = inlined_call_operand.hbm [shape: f32[2,8,32], index: 1, kind: input, shape index: {}]
  %s2 = inlined_call_operand.hbm [shape: f32[2,8,32], index: 2, kind: input, shape index: {}]
  %s3 = inlined_call_operand.hbm [shape: f32[2,16,32], index: 3, kind: output, shape index: {}]
  %s4 = sld [smem:[#allocation0]]
  $region69: #{tpu_custom_call.1} parent=0
    _
  %s6 = ssub.s32 1, %s4
  %s7 = scalar_select 0, %s6, %s4
  $region1: #{tpu_custom_call.1} parent=0
    #allocation5 [shape = 'u8[16384]{0}', space=vmem, size = 0x4000, scoped, tag = 'input window, operand 0']
    #allocation6 [shape = 's32[2]{0}', space=sflag, size = 0x8, scoped, tag = 'scoped memory for tpu_custom_call.1']
    #allocation7 [shape = 's32[2]{0}', space=sflag, size = 0x8, scoped, tag = 'scoped memory for tpu_custom_call.1']
    #allocation8 [shape = 'u8[8192]{0}', space=vmem, size = 0x2000, scoped, tag = 'input window, operand 1']
    #allocation9 [shape = 's32[2]{0}', space=sflag, size = 0x8, scoped, tag = 'scoped memory for tpu_custom_call.1']
    #allocation10 [shape = 'u8[8192]{0}', space=vmem, size = 0x2000, scoped, tag = 'input window, operand 2']
    #allocation11 [shape = 'u8[16384]{0}', space=vmem, size = 0x4000, scoped, tag = 'output window, operand 0']
    %8 = vsyncpa [#allocation6], 0
    %s9 = scalar_lea.sflag [#allocation6], 1
    %10 = vsyncpa %s9, 0
    %11 = vsyncpa [#allocation9], 0
    %s12 = scalar_lea.sflag [#allocation9], 1
    %13 = vsyncpa %s12, 0
    %14 = vsyncpa [#allocation7], 0
    %s15 = scalar_lea.sflag [#allocation7], 1
    %16 = vsyncpa %s15, 0
    loop: start=0, step=1, limit=4
    $region2: #{tpu_custom_call.1} parent=1 // loop_pre_header
      _
    $region3: #{tpu_custom_call.1} parent=1 // loop_header
      %s18 = sphi 0, %s22
      %p19 = scmp.ge.s32.totalorder %s18, 4
      %s25 = sphi 0, %s44
      %s26 = sphi 0, %s40
      %s27 = sphi 0, %s36
      %s28 = sphi 0, %s25
      %s29 = sphi 0, %s26
      %s30 = sphi 0, %s27
      %s31 = sphi 0, %s28
      %s32 = sphi 0, %s29
      %s33 = sphi 0, %s30
      %s49 = sphi 0, %s51
      %s52 = sphi 0, %s49
      %s53 = sphi 0, %s52
      %s69 = sphi 0, %s53
      %s77 = sphi 0, %s79
      %s80 = sphi 0, %s77
      %s81 = sphi 0, %s80
      %s97 = sphi 0, %s81
      %s105 = sphi 0, %s107
      %s108 = sphi 0, %s105
      %s109 = sphi 0, %s108
      %s125 = sphi 0, %s109
      %s133 = sphi 0, %s135
      %s136 = sphi 0, %s133
      %s137 = sphi 0, %s136
      %s153 = sphi 0, %s137
    $region4: #{tpu_custom_call.1} parent=1 // loop_header_branch
      %21 = sbr.rel (%p19) target = $region8
    $region5: #{tpu_custom_call.1} parent=1 // loop_body
      %s23 = ssub.s32 %s18, 1
      %s24 = ssub.s32 %s18, 2
      %s34 = sadd.s32 1, %s27
      %p35 = scmp.ge.s32.totalorder %s34, 1
      %s36 = scalar_select %p35, 0, %s34
      %s37 = sadd.s32 1, %s26
      %s38 = scalar_select %p35, %s37, %s26
      %p39 = scmp.ge.s32.totalorder %s38, 1
      %s40 = scalar_select %p39, 0, %s38
      %s41 = sadd.s32 1, %s25
      %s42 = scalar_select %p39, %s41, %s25
      %p43 = scmp.ge.s32.totalorder %s42, 2
      %s44 = scalar_select %p43, 0, %s42
      %s45 = ssub.s32 %s25, %s44
      %s46 = ssub.s32 %s26, %s40
      %s47 = sor.u32 %s45, %s46
      %p48 = scmp.eq.s32.totalorder %s47, 0
      %s50 = sadd.s32 %s49, 1
      %s51 = scalar_select %p48, %s49, %s50
      %p54 = pneg %p48
      %p55 = scmp.eq.s32.totalorder %s18, 1
      %p56 = por %p54, %p55
      %p57 = scmp.ne.s32.totalorder %s49, %s52
      %p58 = scmp.eq.s32.totalorder %s18, 0
      %p59 = por %p57, %p58
      %p60 = scmp.ne.s32.totalorder %s49, %s52
      %p61 = scmp.eq.s32.totalorder %s23, 1
      %p62 = por %p60, %p61
      %p63 = scmp.ne.s32.totalorder %s52, %s53
      %p64 = scmp.eq.s32.totalorder %s23, 0
      %p65 = por %p63, %p64
      %p66 = scmp.ne.s32.totalorder %s52, %s53
      %p67 = scmp.eq.s32.totalorder %s24, 1
      %p68 = por %p66, %p67
      %p70 = scmp.ne.s32.totalorder %s53, %s69
      %p71 = scmp.eq.s32.totalorder %s24, 0
      %p72 = por %p70, %p71
      %s73 = ssub.s32 %s25, %s44
      %s74 = ssub.s32 %s27, %s36
      %s75 = sor.u32 %s73, %s74
      %p76 = scmp.eq.s32.totalorder %s75, 0
      %s78 = sadd.s32 %s77, 1
      %s79 = scalar_select %p76, %s77, %s78
      %p82 = pneg %p76
      %p83 = scmp.eq.s32.totalorder %s18, 1
      %p84 = por %p82, %p83
      %p85 = scmp.ne.s32.totalorder %s77, %s80
      %p86 = scmp.eq.s32.totalorder %s18, 0
      %p87 = por %p85, %p86
      %p88 = scmp.ne.s32.totalorder %s77, %s80
      %p89 = scmp.eq.s32.totalorder %s23, 1
      %p90 = por %p88, %p89
      %p91 = scmp.ne.s32.totalorder %s80, %s81
      %p92 = scmp.eq.s32.totalorder %s23, 0
      %p93 = por %p91, %p92
      %p94 = scmp.ne.s32.totalorder %s80, %s81
      %p95 = scmp.eq.s32.totalorder %s24, 1
      %p96 = por %p94, %p95
      %p98 = scmp.ne.s32.totalorder %s81, %s97
      %p99 = scmp.eq.s32.totalorder %s24, 0
      %p100 = por %p98, %p99
      %s101 = ssub.s32 %s25, %s44
      %s102 = ssub.s32 %s27, %s36
      %s103 = sor.u32 %s101, %s102
      %p104 = scmp.eq.s32.totalorder %s103, 0
      %s106 = sadd.s32 %s105, 1
      %s107 = scalar_select %p104, %s105, %s106
      %p110 = pneg %p104
      %p111 = scmp.eq.s32.totalorder %s18, 1
      %p112 = por %p110, %p111
      %p113 = scmp.ne.s32.totalorder %s105, %s108
      %p114 = scmp.eq.s32.totalorder %s18, 0
      %p115 = por %p113, %p114
      %p116 = scmp.ne.s32.totalorder %s105, %s108
      %p117 = scmp.eq.s32.totalorder %s23, 1
      %p118 = por %p116, %p117
      %p119 = scmp.ne.s32.totalorder %s108, %s109
      %p120 = scmp.eq.s32.totalorder %s23, 0
      %p121 = por %p119, %p120
      %p122 = scmp.ne.s32.totalorder %s108, %s109
      %p123 = scmp.eq.s32.totalorder %s24, 1
      %p124 = por %p122, %p123
      %p126 = scmp.ne.s32.totalorder %s109, %s125
      %p127 = scmp.eq.s32.totalorder %s24, 0
      %p128 = por %p126, %p127
      %s129 = ssub.s32 %s25, %s44
      %s130 = ssub.s32 %s26, %s40
      %s131 = sor.u32 %s129, %s130
      %p132 = scmp.eq.s32.totalorder %s131, 0
      %s134 = sadd.s32 %s133, 1
      %s135 = scalar_select %p132, %s133, %s134
      %p138 = pneg %p132
      %p139 = scmp.eq.s32.totalorder %s18, 1
      %p140 = por %p138, %p139
      %p141 = scmp.ne.s32.totalorder %s133, %s136
      %p142 = scmp.eq.s32.totalorder %s18, 0
      %p143 = por %p141, %p142
      %p144 = scmp.ne.s32.totalorder %s133, %s136
      %p145 = scmp.eq.s32.totalorder %s23, 1
      %p146 = por %p144, %p145
      %p147 = scmp.ne.s32.totalorder %s136, %s137
      %p148 = scmp.eq.s32.totalorder %s23, 0
      %p149 = por %p147, %p148
      %p150 = scmp.ne.s32.totalorder %s136, %s137
      %p151 = scmp.eq.s32.totalorder %s24, 1
      %p152 = por %p150, %p151
      %p154 = scmp.ne.s32.totalorder %s137, %s153
      %p155 = scmp.eq.s32.totalorder %s24, 0
      %p156 = por %p154, %p155
      %p157 = scmp.le.s32.totalorder 1, %s18
      %p158 = scmp.lt.s32.totalorder %s18, 3
      %p159 = pnand %p157, %p158
      %p160 = pneg %p159
      // Predicated region
      $region9: #{tpu_custom_call.1} parent=5 // pred_check
        _
      $region10: #{tpu_custom_call.1} parent=5 // pred_check_branch
        %162 = sbr.rel (%p159) target = $region12
      $region11: #{tpu_custom_call.1} parent=5 // pred_region
        %s163 = ssub.s32 %s18, 1
      $region12: #{tpu_custom_call.1} parent=5 // pred_fallthru
        _
      %p164 = scmp.lt.s32.totalorder %s18, 2
      // Predicated region
      $region13: #{tpu_custom_call.1} parent=5 // pred_check
        %p165 = pneg %p164
      $region14: #{tpu_custom_call.1} parent=5 // pred_check_branch
        %167 = sbr.rel (%p165) target = $region16
      $region15: #{tpu_custom_call.1} parent=5 // pred_region
        // Predicated region
        $region17: #{tpu_custom_call.1} parent=15 // pred_check
          %p168 = pneg %p59
        $region18: #{tpu_custom_call.1} parent=15 // pred_check_branch
          %170 = sbr.rel (%p168) target = $region20
        $region19: #{tpu_custom_call.1} parent=15 // pred_region
          %s171 = sand.u32 %s49, 1
          %s172 = scalar_lea.sflag [#allocation6], %s171
          %s173 = sand.u32 %s49, 1
          %s174 = smul.addr %s173, 16
          %s175 = scalar_lea.vmem [#allocation5], %s174
          %s176 = smul.u32 2, %s26
          %178 = vsyncadd %s172, 0
          %s179 = smul.addr %s25, 2
          %s180 = sadd.s32 %s176, %s179
          %s181 = smul.addr %s180, 8
          %s182 = scalar_lea.hbm %s0, %s181
          %s183 = sshll.u32 %s182, 4
          %s184 = int_to_ptr.hbm [resolvable:$true] %s183
          %s185 = sshll.u32 %s175, 4
          %s186 = int_to_ptr.vmem [resolvable:$true] %s185
          %191 = dma.hbm_to_vmem [thread:$0]  %s184, 256, %s186, %s172, 128, 128, 8
        $region20: #{tpu_custom_call.1} parent=15 // pred_fallthru
          _
        // Predicated region
        $region21: #{tpu_custom_call.1} parent=15 // pred_check
          %p192 = pneg %p87
        $region22: #{tpu_custom_call.1} parent=15 // pred_check_branch
          %194 = sbr.rel (%p192) target = $region24
        $region23: #{tpu_custom_call.1} parent=15 // pred_region
          %s195 = sand.u32 %s18, 1
          %s196 = scalar_lea.sflag [#allocation9], %s195
          %s197 = sand.u32 %s77, 1
          %s198 = smul.addr %s197, 8
          %s199 = scalar_lea.vmem [#allocation8], %s198
          %201 = vsyncadd %s196, 0
          %s202 = sadd.s32 %s27, %s25
          %s203 = smul.addr %s202, 8
          %s204 = scalar_lea.hbm %s1, %s203
          %s206 = sshll.u32 %s204, 4
          %s207 = int_to_ptr.hbm [resolvable:$true] %s206
          %s208 = sshll.u32 %s199, 4
          %s209 = int_to_ptr.vmem [resolvable:$true] %s208
          %211 = dma.hbm_to_vmem [thread:$0]  %s207, 128, %s209, %s196
        $region24: #{tpu_custom_call.1} parent=15 // pred_fallthru
          _
        // Predicated region
        $region25: #{tpu_custom_call.1} parent=15 // pred_check
          %p212 = pneg %p115
        $region26: #{tpu_custom_call.1} parent=15 // pred_check_branch
          %214 = sbr.rel (%p212) target = $region28
        $region27: #{tpu_custom_call.1} parent=15 // pred_region
          %s215 = sand.u32 %s18, 1
          %s216 = scalar_lea.sflag [#allocation9], %s215
          %s217 = sand.u32 %s105, 1
          %s218 = smul.addr %s217, 8
          %s219 = scalar_lea.vmem [#allocation10], %s218
          %221 = vsyncadd %s216, 0
          %s222 = sadd.s32 %s27, %s25
          %s223 = smul.addr %s222, 8
          %s224 = scalar_lea.hbm %s2, %s223
          %s226 = sshll.u32 %s224, 4
          %s227 = int_to_ptr.hbm [resolvable:$true] %s226
          %s228 = sshll.u32 %s219, 4
          %s229 = int_to_ptr.vmem [resolvable:$true] %s228
          %231 = dma.hbm_to_vmem [thread:$0]  %s227, 128, %s229, %s216
        $region28: #{tpu_custom_call.1} parent=15 // pred_fallthru
          _
      $region16: #{tpu_custom_call.1} parent=5 // pred_fallthru
        _
      %p232 = scmp.le.s32.totalorder 1, %s18
      %p233 = scmp.lt.s32.totalorder %s18, 3
      %p234 = pnand %p232, %p233
      %p235 = pneg %p234
      // Predicated region
      $region29: #{tpu_custom_call.1} parent=5 // pred_check
        _
      $region30: #{tpu_custom_call.1} parent=5 // pred_check_branch
        %237 = sbr.rel (%p234) target = $region32
      $region31: #{tpu_custom_call.1} parent=5 // pred_region
        %s238 = ssub.s32 %s18, 1
        %s239 = sand.u32 %s52, 1
        %s240 = scalar_lea.sflag [#allocation6], %s239
        %s241 = sand.u32 %s52, 1
        %s242 = smul.addr %s241, 16
        %s243 = scalar_lea.vmem [#allocation5], %s242
        // Predicated region
        $region33: #{tpu_custom_call.1} parent=31 // pred_check
          %p244 = pneg %p65
        $region34: #{tpu_custom_call.1} parent=31 // pred_check_branch
          %246 = sbr.rel (%p244) target = $region36
        $region35: #{tpu_custom_call.1} parent=31 // pred_region
          %248 = dma.done %s240, 256
        $region36: #{tpu_custom_call.1} parent=31 // pred_fallthru
          _
        %s249 = sand.u32 %s23, 1
        %s250 = scalar_lea.sflag [#allocation9], %s249
        %s251 = sand.u32 %s80, 1
        %s252 = smul.addr %s251, 8
        %s253 = scalar_lea.vmem [#allocation8], %s252
        // Predicated region
        $region37: #{tpu_custom_call.1} parent=31 // pred_check
          %p254 = pneg %p93
        $region38: #{tpu_custom_call.1} parent=31 // pred_check_branch
          %256 = sbr.rel (%p254) target = $region40
        $region39: #{tpu_custom_call.1} parent=31 // pred_region
          %258 = dma.done %s250, 128
        $region40: #{tpu_custom_call.1} parent=31 // pred_fallthru
          _
        %s259 = sand.u32 %s23, 1
        %s260 = scalar_lea.sflag [#allocation9], %s259
        %s261 = sand.u32 %s108, 1
        %s262 = smul.addr %s261, 8
        %s263 = scalar_lea.vmem [#allocation10], %s262
        // Predicated region
        $region41: #{tpu_custom_call.1} parent=31 // pred_check
          %p264 = pneg %p121
        $region42: #{tpu_custom_call.1} parent=31 // pred_check_branch
          %266 = sbr.rel (%p264) target = $region44
        $region43: #{tpu_custom_call.1} parent=31 // pred_region
          %268 = dma.done %s260, 128
        $region44: #{tpu_custom_call.1} parent=31 // pred_fallthru
          _
        %s269 = sand.u32 %s52, 1
        %s270 = scalar_lea.sflag [#allocation6], %s269
        %s271 = sand.u32 %s52, 1
        %s272 = smul.addr %s271, 16
        %s273 = scalar_lea.vmem [#allocation5], %s272
        %p274 = pneg %p65
        %p275 = pneg %p62
        %s276 = sand.u32 %s23, 1
        %s277 = scalar_lea.sflag [#allocation9], %s276
        %s278 = sand.u32 %s80, 1
        %s279 = smul.addr %s278, 8
        %s280 = scalar_lea.vmem [#allocation8], %s279
        %p281 = pneg %p93
        %p282 = pneg %p90
        %s283 = sand.u32 %s23, 1
        %s284 = scalar_lea.sflag [#allocation9], %s283
        %s285 = sand.u32 %s108, 1
        %s286 = smul.addr %s285, 8
        %s287 = scalar_lea.vmem [#allocation10], %s286
        %p288 = pneg %p121
        %p289 = pneg %p118
        %p290 = pneg %p149
        %p291 = pneg %p146
        %s292 = sand.u32 %s136, 1
        %s293 = scalar_lea.sflag [#allocation7], %s292
        %s294 = sand.u32 %s136, 1
        %s295 = smul.addr %s294, 16
        %s296 = scalar_lea.vmem [#allocation11], %s295
        %s297 = smul.u32 2, %s29
        %s298 = smul.u32 2, %s29
        %p299 = scmp.eq.s32.totalorder %s30, 0
        // Predicated region
        $region45: #{tpu_custom_call.1} parent=31 // pred_check
          %p300 = pneg %p299
        $region46: #{tpu_custom_call.1} parent=31 // pred_check_branch
          %302 = sbr.rel (%p300) target = $region48
        $region47: #{tpu_custom_call.1} parent=31 // pred_region
          %vm303 = vcmask 7168
          %304 = vst.msk [vmem:[#allocation2] sm:$0xff] %vm303, -2.3819763e+38
          %305 = vst.msk [vmem:[#allocation2 + $0x8] sm:$0xff] %vm303, -2.3819763e+38
          %306 = vst.msk [vmem:[#allocation3] sm:$0xff] %vm303, 0.0
          %307 = vst.msk [vmem:[#allocation3 + $0x8] sm:$0xff] %vm303, 0.0
          %vm308 = vcmask 261120
          %309 = vst.msk [vmem:[#allocation4] sm:$0xff] %vm308, 0.0
          %310 = vst.msk [vmem:[#allocation4 + $0x8] sm:$0xff] %vm308, 0.0
        $region48: #{tpu_custom_call.1} parent=31 // pred_fallthru
          _
        %s311 = smul.u32 %s30, 8
        %p312 = scmp.le.s32.totalorder %s311, 7
        // Predicated region
        $region49: #{tpu_custom_call.1} parent=31 // pred_check
          %p313 = pneg %p312
        $region50: #{tpu_custom_call.1} parent=31 // pred_check_branch
          %315 = sbr.rel (%p313) target = $region52
        $region51: #{tpu_custom_call.1} parent=31 // pred_region
          %v316 = vld [vmem:[%s243] sm:$0xff]
          %v317 = vld [vmem:[%s243 + $0x8] sm:$0xff]
          %v318 = vld [vmem:[%s253] sm:$0xff]
          %vm319 = vcmask 261120
          %v321 = vsel %vm319, %v316, 0
          %v324 = vsel %vm319, %v317, 0
          %v327 = vsel %vm319, %v318, 0
          %329 = vmatpush.xpose.msra.mxu0 0.0
          %330 = vmatpush.xpose.msra.mxu0 0.0
          %331 = vmatpush.xpose.msra.mxu0 0.0
          %332 = vmatpush.xpose.msra.mxu0 0.0
          %333 = vmatpush.xpose.msra.mxu0 0.0
          %334 = vmatpush.xpose.msra.mxu0 0.0
          %335 = vmatpush.xpose.msra.mxu0 0.0
          %336 = vmatpush.xpose.msra.mxu0 0.0
          %337 = vmatpush.xpose.msra.mxu0 0.0
          %338 = vmatpush.xpose.msra.mxu0 0.0
          %339 = vmatpush.xpose.msra.mxu0 0.0
          %340 = vmatpush.xpose.msra.mxu0 0.0
          %341 = vmatpush.xpose.msra.mxu0 0.0
          %342 = vmatpush.xpose.msra.mxu0 0.0
          %343 = vmatpush.xpose.msra.mxu0 0.0
          %344 = vmatpush.xpose.msra.mxu0 %v327
          %345 = vmatmul.f32.gmra.mxu0 %v321
          %v346 = vpop.f32.mrf.mxu0
          %v347 = vadd.f32 0.0, %v346
          %348 = vmatmul.f32.gmra.mxu0 %v324
          %v349 = vpop.f32.mrf.mxu0
          %v350 = vadd.f32 0.0, %v349
          %351 = vdwg.mxu0
          %v352 = vmul.f32 %v347, 0.17677669
          %v353 = vmul.f32 %v350, 0.17677669
          %v354 = vlaneseq
          %v355 = vshrl.u32 %v354, 7
          %v356 = vadd.s32 %v355, 8
          %s357 = smul.u32 %s29, 16
          %v358 = vstv %s357
          %v359 = vadd.s32 %v355, %v358
          %v360 = vadd.s32 %v356, %v358
          %v361 = vand.u32 %v359, 7
          %v362 = vand.u32 %v360, 7
          %v363 = vlaneseq
          %v364 = vand.u32 %v363, 127
          %s365 = ssub.s32 0, %s311
          %v366 = vstv %s365
          %v367 = vadd.s32 %v361, %v366
          %v368 = vadd.s32 %v362, %v366
          %vm369 = vcmp.le.s32.totalorder %v364, %v367
          %vm370 = vcmp.le.s32.totalorder %v364, %v368
          %v371 = vsel %vm369, %v352, -2.3819763e+38
          %v372 = vsel %vm370, %v353, -2.3819763e+38
          %v373 = vld [vmem:[#allocation2] sm:$0xff]
          %v374 = vld [vmem:[#allocation2 + $0x8] sm:$0xff]
          %vm375 = vcmask 64512
          %v376 = vsel %vm375, %v371, -inf
          %377 = vmax.xlane.f32.xlu0 %v376
          %v378 = vpop.xlane.xlu0 %377
          %v379 = vsel %vm375, %v372, -inf
          %380 = vmax.xlane.f32.xlu0 %v379
          %v381 = vpop.xlane.xlu0 %380
          %v382 = vmax.f32 %v373, %v378
          %v383 = vmax.f32 %v374, %v381
          %v384 = vsub.f32 %v373, %v382
          %v385 = vsub.f32 %v374, %v383
          %v386 = vmul.f32 %v384, 1.442695
          %v387 = vpow.pop %v386
          %v388 = vmul.f32 %v385, 1.442695
          %v389 = vpow.pop %v388
          %391 = vset.pattern.permute.xlu0 0
          %392 = vperm.xlu0 %391, %v382
          %v393 = vpop.permute.xlu0 %392
          %396 = vset.pattern.permute.xlu0 0
          %397 = vperm.xlu0 %396, %v383
          %v398 = vpop.permute.xlu0 %397
          %v400 = vsub.f32 %v371, %v393
          %v401 = vsub.f32 %v372, %v398
          %v402 = vmul.f32 %v400, 1.442695
          %v403 = vpow.pop %v402
          %v404 = vmul.f32 %v401, 1.442695
          %v405 = vpow.pop %v404
          %v406 = vld [vmem:[#allocation3] sm:$0xff]
          %v407 = vld [vmem:[#allocation3 + $0x8] sm:$0xff]
          %v408 = vmul.f32 %v387, %v406
          %v409 = vmul.f32 %v389, %v407
          %v410 = vsel %vm375, %v403, 0.0
          %411 = vadd.xlane.f32.xlu0 %v410
          %v412 = vpop.xlane.xlu0 %411
          %v413 = vsel %vm375, %v405, 0.0
          %414 = vadd.xlane.f32.xlu0 %v413
          %v415 = vpop.xlane.xlu0 %414
          %v416 = vadd.f32 %v408, %v412
          %v417 = vadd.f32 %v409, %v415
          %vm418 = vcmask 7168
          %419 = vst.msk [vmem:[#allocation3] sm:$0xff] %vm418, %v416
          %420 = vst.msk [vmem:[#allocation3 + $0x8] sm:$0xff] %vm418, %v417
          %v421 = vld [vmem:[#allocation4] sm:$0xff]
          %v422 = vld [vmem:[#allocation4 + $0x8] sm:$0xff]
          %424 = vset.pattern.permute.xlu0 0
          %425 = vperm.xlu0 %424, %v387
          %v426 = vpop.permute.xlu0 %425
          %429 = vset.pattern.permute.xlu0 0
          %430 = vperm.xlu0 %429, %v389
          %v431 = vpop.permute.xlu0 %430
          %v433 = vmul.f32 %v426, %v421
          %v434 = vmul.f32 %v431, %v422
          %v435 = vld [vmem:[%s263] sm:$0xff]
          %v437 = vsel %vm375, %v403, 0
          %v440 = vsel %vm375, %v405, 0
          %442 = vmatpush.msra.mxu0 0.0
          %443 = vmatpush.msra.mxu0 0.0
          %444 = vmatpush.msra.mxu0 0.0
          %445 = vmatpush.msra.mxu0 0.0
          %446 = vmatpush.msra.mxu0 0.0
          %447 = vmatpush.msra.mxu0 0.0
          %448 = vmatpush.msra.mxu0 0.0
          %449 = vmatpush.msra.mxu0 0.0
          %450 = vmatpush.msra.mxu0 0.0
          %451 = vmatpush.msra.mxu0 0.0
          %452 = vmatpush.msra.mxu0 0.0
          %453 = vmatpush.msra.mxu0 0.0
          %454 = vmatpush.msra.mxu0 0.0
          %455 = vmatpush.msra.mxu0 0.0
          %456 = vmatpush.msra.mxu0 0.0
          %457 = vmatpush.msra.mxu0 %v435
          %458 = vmatmul.f32.gmra.mxu0 %v437
          %v459 = vpop.f32.mrf.mxu0
          %v460 = vadd.f32 0.0, %v459
          %461 = vmatmul.f32.gmra.mxu0 %v440
          %v462 = vpop.f32.mrf.mxu0
          %v463 = vadd.f32 0.0, %v462
          %464 = vdwg.mxu0
          %v465 = vadd.f32 %v433, %v460
          %v466 = vadd.f32 %v434, %v463
          %467 = vst.msk [vmem:[#allocation4] sm:$0xff] %vm319, %v465
          %468 = vst.msk [vmem:[#allocation4 + $0x8] sm:$0xff] %vm319, %v466
          %469 = vst.msk [vmem:[#allocation2] sm:$0xff] %vm418, %v382
          %470 = vst.msk [vmem:[#allocation2 + $0x8] sm:$0xff] %vm418, %v383
        $region52: #{tpu_custom_call.1} parent=31 // pred_fallthru
          _
        // Predicated region
        $region53: #{tpu_custom_call.1} parent=31 // pred_check
          %p471 = pneg %p299
        $region54: #{tpu_custom_call.1} parent=31 // pred_check_branch
          %473 = sbr.rel (%p471) target = $region56
        $region55: #{tpu_custom_call.1} parent=31 // pred_region
          %v474 = vld [vmem:[#allocation4] sm:$0xff]
          %v475 = vld [vmem:[#allocation4 + $0x8] sm:$0xff]
          %v476 = vld [vmem:[#allocation3] sm:$0xff]
          %v477 = vld [vmem:[#allocation3 + $0x8] sm:$0xff]
          %v478 = vrcp.pop %v476
          %v479 = vmul.f32 %v476, %v478
          %v480 = vsub.f32 1.0, %v479
          %v481 = vmul.f32 %v478, %v480
          %v482 = vadd.f32 %v478, %v481
          %vm483 = vweird.f32 %v476
          %vm484 = vweird.f32 %v478
          %vm485 = vmor %vm483, %vm484
          %v486 = vsel %vm485, %v478, %v482
          %v487 = vand.u32 2147483647, %v476
          %vm488 = vcmp.eq.f32.partialorder %v487, 8.507059e+37
          %v489 = vand.u32 %v476, 2147483648
          %v490 = vor.u32 1.1754944e-38, %v489
          %v491 = vsel %vm488, %v490, %v486
          %v492 = vmul.f32 1.0, %v491
          %v493 = vrcp.pop %v477
          %v494 = vmul.f32 %v477, %v493
          %v495 = vsub.f32 1.0, %v494
          %v496 = vmul.f32 %v493, %v495
          %v497 = vadd.f32 %v493, %v496
          %vm498 = vweird.f32 %v477
          %vm499 = vweird.f32 %v493
          %vm500 = vmor %vm498, %vm499
          %v501 = vsel %vm500, %v493, %v497
          %v502 = vand.u32 2147483647, %v477
          %vm503 = vcmp.eq.f32.partialorder %v502, 8.507059e+37
          %v504 = vand.u32 %v477, 2147483648
          %v505 = vor.u32 1.1754944e-38, %v504
          %v506 = vsel %vm503, %v505, %v501
          %v507 = vmul.f32 1.0, %v506
          %509 = vset.pattern.permute.xlu0 0
          %510 = vperm.xlu0 %509, %v492
          %v511 = vpop.permute.xlu0 %510
          %514 = vset.pattern.permute.xlu0 0
          %515 = vperm.xlu0 %514, %v507
          %v516 = vpop.permute.xlu0 %515
          %v518 = vmul.f32 %v474, %v511
          %v519 = vmul.f32 %v475, %v516
          %vm520 = vcmask 261120
          %521 = vst.msk [vmem:[%s296] sm:$0xff] %vm520, %v518
          %522 = vst.msk [vmem:[%s296 + $0x8] sm:$0xff] %vm520, %v519
        $region56: #{tpu_custom_call.1} parent=31 // pred_fallthru
          _
        %s523 = sand.u32 %s136, 1
        %s524 = scalar_lea.sflag [#allocation7], %s523
        %s525 = sand.u32 %s136, 1
        %s526 = smul.addr %s525, 16
        %s527 = scalar_lea.vmem [#allocation11], %s526
        // Predicated region
        $region57: #{tpu_custom_call.1} parent=31 // pred_check
          %p528 = pneg %p146
        $region58: #{tpu_custom_call.1} parent=31 // pred_check_branch
          %530 = sbr.rel (%p528) target = $region60
        $region59: #{tpu_custom_call.1} parent=31 // pred_region
          %s531 = smul.u32 2, %s29
          %533 = vsyncadd %s524, 0
          %s534 = smul.addr %s28, 2
          %s535 = sadd.s32 %s531, %s534
          %s536 = smul.addr %s535, 8
          %s537 = scalar_lea.hbm %s3, %s536
          %s538 = sshll.u32 %s527, 4
          %s539 = int_to_ptr.vmem [resolvable:$true] %s538
          %s540 = sshll.u32 %s537, 4
          %s541 = int_to_ptr.hbm [resolvable:$true] %s540
          %546 = dma.vmem_to_hbm [thread:$0]  %s539, 256, %s541, %s524, 128, 128, 8
        $region60: #{tpu_custom_call.1} parent=31 // pred_fallthru
          _
      $region32: #{tpu_custom_call.1} parent=5 // pred_fallthru
        _
      %p547 = scmp.le.s32.totalorder 2, %s18
      // Predicated region
      $region61: #{tpu_custom_call.1} parent=5 // pred_check
        %p548 = pneg %p547
      $region62: #{tpu_custom_call.1} parent=5 // pred_check_branch
        %550 = sbr.rel (%p548) target = $region64
      $region63: #{tpu_custom_call.1} parent=5 // pred_region
        %s551 = ssub.s32 %s18, 2
        // Predicated region
        $region65: #{tpu_custom_call.1} parent=63 // pred_check
          %p552 = pneg %p152
        $region66: #{tpu_custom_call.1} parent=63 // pred_check_branch
          %554 = sbr.rel (%p552) target = $region68
        $region67: #{tpu_custom_call.1} parent=63 // pred_region
          %s555 = sand.u32 %s137, 1
          %s556 = scalar_lea.sflag [#allocation7], %s555
          %s557 = sand.u32 %s137, 1
          %s558 = smul.addr %s557, 16
          %s559 = scalar_lea.vmem [#allocation11], %s558
          %561 = dma.done %s556, 256
        $region68: #{tpu_custom_call.1} parent=63 // pred_fallthru
          _
      $region64: #{tpu_custom_call.1} parent=5 // pred_fallthru
        _
    $region6: #{tpu_custom_call.1} parent=1 // loop_footer
      %s22 = sadd.s32 1, %s18
    $region7: #{tpu_custom_call.1} parent=1 // loop_footer_branch
      %17 = sbr.rel target = $region3
    $region8: #{tpu_custom_call.1} parent=1 // loop_exit
      _
    %562 = vsyncpa [#allocation6], 1
    %s563 = scalar_lea.sflag [#allocation6], 1
    %564 = vsyncpa %s563, 1
    %565 = vsyncpa [#allocation9], 1
    %s566 = scalar_lea.sflag [#allocation9], 1
    %567 = vsyncpa %s566, 1
    %568 = vsyncpa [#allocation7], 1
    %s569 = scalar_lea.sflag [#allocation7], 1
    %570 = vsyncpa %s569, 1

</llo_original>
